<compile_context>
chip_gen: v5e
topology: v5e:2x2
jax: 0.10.0
libtpu: 0.0.40
codegen_flags: <defaults>
</compile_context>

<pallas_src>
import functools

import jax
import jax.numpy as jnp
from jax.experimental import pallas as pl
from jax.experimental.pallas import tpu as pltpu


def last_unit_kernel(x_ref, wc_ref, bc_ref, wf_ref, bf_ref, out_ref, acc_ref,
                     *, inv_pixels):
    # x_ref : (1, C, TP)   one batch row, all channels, a tile of pixels (NCHW layout)
    # wc_ref: (F, C)       1x1 conv weight
    # bc_ref: (1, F)       conv bias
    # wf_ref: (Kp, F)      fc weight, zero-padded to lane-dense Kp (multiple of 128)
    # bf_ref: (1, Kp)      fc bias, zero-padded
    # out   : (1, 1, Kp)
    # acc   : (1, C) f32   running channel sum over pixels
    p_idx = pl.program_id(1)

    @pl.when(p_idx == 0)
    def _init():
        acc_ref[...] = jnp.zeros_like(acc_ref)

    # Streaming channel-sum over the pixel (lane) axis; accumulate in f32.
    x = x_ref[...]                                            # (1, C, TP), native dtype
    acc_ref[...] += jnp.sum(x.astype(jnp.float32), axis=2)    # (1, C)

    @pl.when(p_idx == pl.num_programs(1) - 1)
    def _finalize():
        pooled = acc_ref[...] * inv_pixels                    # (1, C)  == avg pool of x
        # 1x1 conv applied after pooling (exact: mean(xW+b) = mean(x)W+b)
        feat = jax.lax.dot_general(
            pooled, wc_ref[...],
            dimension_numbers=(((1,), (1,)), ((), ())),       # contract C with C
            preferred_element_type=jnp.float32) + bc_ref[...]  # (1, F)
        logits = jax.lax.dot_general(
            feat, wf_ref[...],
            dimension_numbers=(((1,), (1,)), ((), ())),       # contract F with F
            preferred_element_type=jnp.float32) + bf_ref[...]  # (1, Kp)
        out_ref[...] = logits[None].astype(out_ref.dtype)     # (1, 1, Kp)


def _pick_pixel_tile(p, c, itemsize, max_tile_bytes=4 << 20):
    """Largest multiple of 128 that divides P while keeping one (C, TP) x-tile
    <= max_tile_bytes (so the double-buffered input stream fits comfortably in
    scoped VMEM on v5e/v6e/v7x).  Falls back to the full pixel extent when P is
    not 128-aligned."""
    if p % 128 != 0:
        return p
    best = 128
    t = p
    while t >= 128:
        if t % 128 == 0 and p % t == 0 and c * t * itemsize <= max_tile_bytes:
            best = t
            break
        t //= 2
    # also try the largest 128-multiple divisor below the byte cap (non power of two)
    cap_elems = max(128, (max_tile_bytes // (c * itemsize)) // 128 * 128)
    d = min(p, cap_elems)
    while d >= 128:
        if p % d == 0 and d % 128 == 0:
            best = max(best, d)
            break
        d -= 128
    return best


def last_unit_forward(x_nchw, wc, bc, wf, bf):
    n, c, h, w = x_nchw.shape
    f = wc.shape[0]
    k = wf.shape[0]
    p = h * w

    # Free reshape of the native NCHW layout (no transpose, no dtype cast):
    # pixels land on the 128-lane axis for a lane-dense streaming reduction.
    x3 = x_nchw.reshape(n, c, p)

    # Lane-dense output slab: pad fc weight/bias to Kp = ceil(K/128)*128.
    kp = ((k + 127) // 128) * 128
    wf_p = jnp.zeros((kp, f), wf.dtype).at[:k, :].set(wf)
    bf_p = jnp.zeros((1, kp), bf.dtype).at[0, :k].set(bf)
    bc2 = bc.reshape(1, f)

    itemsize = jnp.dtype(x3.dtype).itemsize
    tp = _pick_pixel_tile(p, c, itemsize)
    grid = (n, p // tp)

    cost = pl.CostEstimate(
        flops=2 * n * c * p + 2 * n * c * f + 2 * n * f * kp,
        transcendentals=0,
        bytes_accessed=n * c * p * itemsize
        + (f * c + f + kp * f + kp) * 4
        + n * kp * 4,
    )

    out = pl.pallas_call(
        functools.partial(last_unit_kernel, inv_pixels=1.0 / float(p)),
        out_shape=jax.ShapeDtypeStruct((n, 1, kp), jnp.float32),
        grid_spec=pltpu.PrefetchScalarGridSpec(
            num_scalar_prefetch=0,
            grid=grid,
            in_specs=[
                pl.BlockSpec((1, c, tp), lambda ni, pi: (ni, 0, pi)),  # x stream
                pl.BlockSpec((f, c), lambda ni, pi: (0, 0)),           # conv weight
                pl.BlockSpec((1, f), lambda ni, pi: (0, 0)),           # conv bias
                pl.BlockSpec((kp, f), lambda ni, pi: (0, 0)),          # fc weight (padded)
                pl.BlockSpec((1, kp), lambda ni, pi: (0, 0)),          # fc bias (padded)
            ],
            out_specs=pl.BlockSpec((1, 1, kp), lambda ni, pi: (ni, 0, 0)),
            scratch_shapes=[pltpu.VMEM((1, c), jnp.float32)],          # channel-sum acc
        ),
        compiler_params=pltpu.CompilerParams(
            dimension_semantics=("parallel", "arbitrary"),
            vmem_limit_bytes=64 << 20),
        cost_estimate=cost,
    )(x3, wc, bc2, wf_p, bf_p)

    return out.reshape(n, kp)[:, :k]


def last_unit_reference(x_nchw, wc, bc, wf, bf):
    # pure-JAX reference mirroring the PyTorch module (conv -> pool -> flatten -> fc)
    y = jnp.einsum("nchw,fc->nfhw", x_nchw, wc) + bc[None, :, None, None]
    pooled = y.mean(axis=(2, 3))          # adaptive_avg_pool2d((1,1)) + flatten
    return pooled @ wf.T + bf             # fc


if __name__ == "__main__":
    # small shapes consistent with LastUnit(in_planes, last_feature_size, cnt_classes)
    N, C, H, W = 2, 4, 16, 16          # input  (batch, in_planes, H, W)
    F_ = 32                            # last_feature_size
    K = 8                              # cnt_classes

    key = jax.random.PRNGKey(0)
    kx, kwc, kbc, kwf, kbf = jax.random.split(key, 5)

    x = jax.random.normal(kx, (N, C, H, W), dtype=jnp.float32)

    conv_bound = 1.0 / jnp.sqrt(C * 1 * 1)
    wc = jax.random.uniform(kwc, (F_, C), minval=-conv_bound, maxval=conv_bound,
                            dtype=jnp.float32)   # Conv2d 1x1 weight (F, C, 1, 1) squeezed
    bc = jax.random.uniform(kbc, (F_,), minval=-conv_bound, maxval=conv_bound,
                            dtype=jnp.float32)
    fc_bound = 1.0 / jnp.sqrt(F_)
    wf = jax.random.uniform(kwf, (K, F_), minval=-fc_bound, maxval=fc_bound,
                            dtype=jnp.float32)   # Linear weight (out, in)
    bf = jax.random.uniform(kbf, (K,), minval=-fc_bound, maxval=fc_bound,
                            dtype=jnp.float32)

    out = last_unit_forward(x, wc, bc, wf, bf)
    out = jax.block_until_ready(out)

    ref = last_unit_reference(x, wc, bc, wf, bf)
    assert out.shape == (N, K), out.shape
    assert jnp.allclose(out, ref, atol=1e-4, rtol=1e-4), "mismatch vs reference"

    print("KERNEL_OK")
</pallas_src>

<mosaic_0001>
module attributes {stable_mosaic.version = 11 : i64} {
  func.func @last_unit_kernel(%arg0: i32, %arg1: i32, %arg2: memref<1x4x256xf32, #tpu.memory_space<vmem>>, %arg3: memref<32x4xf32, #tpu.memory_space<vmem>>, %arg4: memref<1x32xf32, #tpu.memory_space<vmem>>, %arg5: memref<128x32xf32, #tpu.memory_space<vmem>>, %arg6: memref<1x128xf32, #tpu.memory_space<vmem>>, %arg7: memref<1x1x128xf32, #tpu.memory_space<vmem>>, %arg8: memref<1x4xf32, #tpu.memory_space<vmem>>) attributes {dimension_semantics = [#tpu.dimension_semantics<parallel>, #tpu.dimension_semantics<arbitrary>], iteration_bounds = array<i64: 2, 1>, scalar_prefetch = 0 : i64, scratch_operands = 1 : i64, tpu.core_type = #tpu.core_type<tc>, window_params = [{transform_indices = @transform_0, window_bounds = array<i64: 1, 4, 256>}, {pipeline_mode = #tpu.pipeline_mode<synchronous>, transform_indices = @transform_1, window_bounds = array<i64: 32, 4>}, {pipeline_mode = #tpu.pipeline_mode<synchronous>, transform_indices = @transform_2, window_bounds = array<i64: 1, 32>}, {pipeline_mode = #tpu.pipeline_mode<synchronous>, transform_indices = @transform_3, window_bounds = array<i64: 128, 32>}, {pipeline_mode = #tpu.pipeline_mode<synchronous>, transform_indices = @transform_4, window_bounds = array<i64: 1, 128>}, {transform_indices = @transform_5, window_bounds = array<i64: 1, 1, 128>}]} {
    %c0_i32 = arith.constant 0 : i32
    %0 = arith.cmpi eq, %arg1, %c0_i32 : i32
    %1 = arith.extui %0 : i1 to i32
    %c0_i32_0 = arith.constant 0 : i32
    %2 = arith.cmpi ne, %1, %c0_i32_0 : i32
    scf.if %2 {
      %cst_9 = arith.constant 0.000000e+00 : f32
      %11 = vector.broadcast %cst_9 : f32 to vector<1x4xf32>
      %c0_10 = arith.constant 0 : index
      %c0_11 = arith.constant 0 : index
      %12 = vector.load %arg8[%c0_10, %c0_11] : memref<1x4xf32, #tpu.memory_space<vmem>>, vector<1x4xf32>
      tpu.vector_store %arg8[%c0_10, %c0_11], %11 {strides = array<i32>} : memref<1x4xf32, #tpu.memory_space<vmem>>, vector<1x4xf32>,
    } else {
    }
    %c0 = arith.constant 0 : index
    %c0_1 = arith.constant 0 : index
    %c0_2 = arith.constant 0 : index
    %3 = vector.load %arg2[%c0, %c0_1, %c0_2] : memref<1x4x256xf32, #tpu.memory_space<vmem>>, vector<1x4x256xf32>
    %c0_3 = arith.constant 0 : index
    %c0_4 = arith.constant 0 : index
    %4 = vector.load %arg8[%c0_3, %c0_4] : memref<1x4xf32, #tpu.memory_space<vmem>>, vector<1x4xf32>
    %cst = arith.constant dense<0.000000e+00> : vector<1x4xf32>
    %5 = vector.multi_reduction <add>, %3, %cst [2] : vector<1x4x256xf32> to vector<1x4xf32>
    %6 = arith.addf %4, %5 : vector<1x4xf32>
    %c0_5 = arith.constant 0 : index
    %c0_6 = arith.constant 0 : index
    %7 = vector.load %arg8[%c0_5, %c0_6] : memref<1x4xf32, #tpu.memory_space<vmem>>, vector<1x4xf32>
    tpu.vector_store %arg8[%c0_5, %c0_6], %6 {strides = array<i32>} : memref<1x4xf32, #tpu.memory_space<vmem>>, vector<1x4xf32>,
    %c0_i32_7 = arith.constant 0 : i32
    %8 = arith.cmpi eq, %arg1, %c0_i32_7 : i32
    %9 = arith.extui %8 : i1 to i32
    %c0_i32_8 = arith.constant 0 : i32
    %10 = arith.cmpi ne, %9, %c0_i32_8 : i32
    scf.if %10 {
      %c0_9 = arith.constant 0 : index
      %c0_10 = arith.constant 0 : index
      %11 = vector.load %arg8[%c0_9, %c0_10] : memref<1x4xf32, #tpu.memory_space<vmem>>, vector<1x4xf32>
      %cst_11 = arith.constant 3.906250e-03 : f32
      %12 = vector.broadcast %cst_11 : f32 to vector<1x4xf32>
      %13 = arith.mulf %11, %12 : vector<1x4xf32>
      %c0_12 = arith.constant 0 : index
      %c0_13 = arith.constant 0 : index
      %14 = vector.load %arg3[%c0_12, %c0_13] : memref<32x4xf32, #tpu.memory_space<vmem>>, vector<32x4xf32>
      %cst_14 = arith.constant dense<0.000000e+00> : vector<1x32xf32>
      %15 = tpu.matmul %13, %14, %cst_14 {dimension_numbers = #tpu.dot_dimension_numbers<[1], [1], [0], [0], [0, 0, 1, 0], [], []>} : vector<1x4xf32>, vector<32x4xf32>, vector<1x32xf32> -> vector<1x32xf32>
      %c0_15 = arith.constant 0 : index
      %c0_16 = arith.constant 0 : index
      %16 = vector.load %arg4[%c0_15, %c0_16] : memref<1x32xf32, #tpu.memory_space<vmem>>, vector<1x32xf32>
      %17 = arith.addf %15, %16 : vector<1x32xf32>
      %c0_17 = arith.constant 0 : index
      %c0_18 = arith.constant 0 : index
      %18 = vector.load %arg5[%c0_17, %c0_18] : memref<128x32xf32, #tpu.memory_space<vmem>>, vector<128x32xf32>
      %cst_19 = arith.constant dense<0.000000e+00> : vector<1x128xf32>
      %19 = tpu.matmul %17, %18, %cst_19 {dimension_numbers = #tpu.dot_dimension_numbers<[1], [1], [0], [0], [0, 0, 1, 0], [], []>} : vector<1x32xf32>, vector<128x32xf32>, vector<1x128xf32> -> vector<1x128xf32>
      %c0_20 = arith.constant 0 : index
      %c0_21 = arith.constant 0 : index
      %20 = vector.load %arg6[%c0_20, %c0_21] : memref<1x128xf32, #tpu.memory_space<vmem>>, vector<1x128xf32>
      %21 = arith.addf %19, %20 : vector<1x128xf32>
      %22 = vector.shape_cast %21 : vector<1x128xf32> to vector<1x1x128xf32>
      %c0_22 = arith.constant 0 : index
      %c0_23 = arith.constant 0 : index
      %c0_24 = arith.constant 0 : index
      %23 = vector.load %arg7[%c0_22, %c0_23, %c0_24] : memref<1x1x128xf32, #tpu.memory_space<vmem>>, vector<1x1x128xf32>
      tpu.vector_store %arg7[%c0_22, %c0_23, %c0_24], %22 {strides = array<i32>} : memref<1x1x128xf32, #tpu.memory_space<vmem>>, vector<1x1x128xf32>,
    } else {
    }
    return
  }
  func.func @transform_0(%arg0: i32, %arg1: i32) -> (i32, i32, i32) {
    %c0_i32 = arith.constant 0 : i32
    %c0_i32_0 = arith.constant 0 : i32
    return %arg0, %c0_i32, %arg1 : i32, i32, i32
  }
  func.func @transform_1(%arg0: i32, %arg1: i32) -> (i32, i32) {
    %c0_i32 = arith.constant 0 : i32
    %c0_i32_0 = arith.constant 0 : i32
    %c0_i32_1 = arith.constant 0 : i32
    return %c0_i32, %c0_i32_0 : i32, i32
  }
  func.func @transform_2(%arg0: i32, %arg1: i32) -> (i32, i32) {
    %c0_i32 = arith.constant 0 : i32
    %c0_i32_0 = arith.constant 0 : i32
    %c0_i32_1 = arith.constant 0 : i32
    return %c0_i32, %c0_i32_0 : i32, i32
  }
  func.func @transform_3(%arg0: i32, %arg1: i32) -> (i32, i32) {
    %c0_i32 = arith.constant 0 : i32
    %c0_i32_0 = arith.constant 0 : i32
    %c0_i32_1 = arith.constant 0 : i32
    return %c0_i32, %c0_i32_0 : i32, i32
  }
  func.func @transform_4(%arg0: i32, %arg1: i32) -> (i32, i32) {
    %c0_i32 = arith.constant 0 : i32
    %c0_i32_0 = arith.constant 0 : i32
    %c0_i32_1 = arith.constant 0 : i32
    return %c0_i32, %c0_i32_0 : i32, i32
  }
  func.func @transform_5(%arg0: i32, %arg1: i32) -> (i32, i32, i32) {
    %c0_i32 = arith.constant 0 : i32
    %c0_i32_0 = arith.constant 0 : i32
    %c0_i32_1 = arith.constant 0 : i32
    return %arg0, %c0_i32, %c0_i32_0 : i32, i32, i32
  }
}

</mosaic_0001>

<llo_original>
// kernel: tpu_custom_call.1
$region0: #{tpu_custom_call.1}
  #allocation0 [shape = 'u32[]', space=smem, size = 0x4, offset = 0x4, fixed_abs, tag = 'smem constant byte address 0x4 - core index']
  #allocation1 [shape = 'u32[72,128]{1,0:T(1,128)}', space=vmem, size = 0x9000, scoped, tag = 'internal scratch']
  #allocation2 [shape = 'f32[1,4]{1,0:T(1,128)}', space=vmem, size = 0x200, scoped, tag = 'scratch operand']
  %s0 = inlined_call_operand.vmem [shape: f32[2,4,256], index: 0, kind: input, shape index: {}]
  %s1 = inlined_call_operand.vmem [shape: f32[32,4], index: 1, kind: input, shape index: {}]
  %s2 = inlined_call_operand.vmem [shape: f32[1,32], index: 2, kind: input, shape index: {}]
  %s3 = inlined_call_operand.vmem [shape: f32[128,32], index: 3, kind: input, shape index: {}]
  %s4 = inlined_call_operand.vmem [shape: f32[1,128], index: 4, kind: input, shape index: {}]
  %s5 = inlined_call_operand.hbm [shape: f32[2,1,128], index: 5, kind: output, shape index: {}]
  %s6 = sld [smem:[#allocation0]]
  $region61: #{tpu_custom_call.1} parent=0
    _
  %s8 = ssub.s32 1, %s6
  %s9 = scalar_select 0, %s8, %s6
  $region1: #{tpu_custom_call.1} parent=0
    #allocation3 [shape = 'u8[1024]{0}', space=vmem, size = 0x400, scoped, tag = 'output window, operand 0']
    #allocation4 [shape = 's32[2]{0}', space=sflag, size = 0x8, scoped, tag = 'scoped memory for tpu_custom_call.1']
    %10 = vsyncpa [#allocation4], 0
    %s11 = scalar_lea.sflag [#allocation4], 1
    %12 = vsyncpa %s11, 0
    loop: start=0, step=1, limit=4
    $region2: #{tpu_custom_call.1} parent=1 // loop_pre_header
      _
    $region3: #{tpu_custom_call.1} parent=1 // loop_header
      %s14 = sphi 0, %s18
      %p15 = scmp.ge.s32.totalorder %s14, 4
      %s21 = sphi 0, %s33
      %s22 = sphi 0, %s29
      %s23 = sphi 0, %s21
      %s24 = sphi 0, %s22
      %s25 = sphi 0, %s23
      %s26 = sphi 0, %s24
      %s38 = sphi 0, %s40
      %s41 = sphi 0, %s38
      %s42 = sphi 0, %s41
      %s58 = sphi 0, %s42
      %s62 = sphi 0, %s62
      %s64 = sphi 0, %s62
      %s65 = sphi 0, %s64
      %s79 = sphi 0, %s65
      %s83 = sphi 0, %s83
      %s85 = sphi 0, %s83
      %s86 = sphi 0, %s85
      %s100 = sphi 0, %s86
      %s104 = sphi 0, %s104
      %s106 = sphi 0, %s104
      %s107 = sphi 0, %s106
      %s121 = sphi 0, %s107
      %s125 = sphi 0, %s125
      %s127 = sphi 0, %s125
      %s128 = sphi 0, %s127
      %s142 = sphi 0, %s128
      %s148 = sphi 0, %s150
      %s151 = sphi 0, %s148
      %s152 = sphi 0, %s151
      %s168 = sphi 0, %s152
    $region4: #{tpu_custom_call.1} parent=1 // loop_header_branch
      %17 = sbr.rel (%p15) target = $region8
    $region5: #{tpu_custom_call.1} parent=1 // loop_body
      %s19 = ssub.s32 %s14, 1
      %s20 = ssub.s32 %s14, 2
      %s27 = sadd.s32 1, %s22
      %p28 = scmp.ge.s32.totalorder %s27, 1
      %s29 = scalar_select %p28, 0, %s27
      %s30 = sadd.s32 1, %s21
      %s31 = scalar_select %p28, %s30, %s21
      %p32 = scmp.ge.s32.totalorder %s31, 2
      %s33 = scalar_select %p32, 0, %s31
      %s34 = ssub.s32 %s21, %s33
      %s35 = ssub.s32 %s22, %s29
      %s36 = sor.u32 %s34, %s35
      %p37 = scmp.eq.s32.totalorder %s36, 0
      %s39 = sadd.s32 %s38, 1
      %s40 = scalar_select %p37, %s38, %s39
      %p43 = pneg %p37
      %p44 = scmp.eq.s32.totalorder %s14, 1
      %p45 = por %p43, %p44
      %p46 = scmp.ne.s32.totalorder %s38, %s41
      %p47 = scmp.eq.s32.totalorder %s14, 0
      %p48 = por %p46, %p47
      %p49 = scmp.ne.s32.totalorder %s38, %s41
      %p50 = scmp.eq.s32.totalorder %s19, 1
      %p51 = por %p49, %p50
      %p52 = scmp.ne.s32.totalorder %s41, %s42
      %p53 = scmp.eq.s32.totalorder %s19, 0
      %p54 = por %p52, %p53
      %p55 = scmp.ne.s32.totalorder %s41, %s42
      %p56 = scmp.eq.s32.totalorder %s20, 1
      %p57 = por %p55, %p56
      %p59 = scmp.ne.s32.totalorder %s42, %s58
      %p60 = scmp.eq.s32.totalorder %s20, 0
      %p61 = por %p59, %p60
      %s63 = sadd.s32 %s62, 1
      %p66 = scmp.eq.s32.totalorder %s14, 1
      %p67 = scmp.ne.s32.totalorder %s62, %s64
      %p68 = scmp.eq.s32.totalorder %s14, 0
      %p69 = por %p67, %p68
      %p70 = scmp.ne.s32.totalorder %s62, %s64
      %p71 = scmp.eq.s32.totalorder %s19, 1
      %p72 = por %p70, %p71
      %p73 = scmp.ne.s32.totalorder %s64, %s65
      %p74 = scmp.eq.s32.totalorder %s19, 0
      %p75 = por %p73, %p74
      %p76 = scmp.ne.s32.totalorder %s64, %s65
      %p77 = scmp.eq.s32.totalorder %s20, 1
      %p78 = por %p76, %p77
      %p80 = scmp.ne.s32.totalorder %s65, %s79
      %p81 = scmp.eq.s32.totalorder %s20, 0
      %p82 = por %p80, %p81
      %s84 = sadd.s32 %s83, 1
      %p87 = scmp.eq.s32.totalorder %s14, 1
      %p88 = scmp.ne.s32.totalorder %s83, %s85
      %p89 = scmp.eq.s32.totalorder %s14, 0
      %p90 = por %p88, %p89
      %p91 = scmp.ne.s32.totalorder %s83, %s85
      %p92 = scmp.eq.s32.totalorder %s19, 1
      %p93 = por %p91, %p92
      %p94 = scmp.ne.s32.totalorder %s85, %s86
      %p95 = scmp.eq.s32.totalorder %s19, 0
      %p96 = por %p94, %p95
      %p97 = scmp.ne.s32.totalorder %s85, %s86
      %p98 = scmp.eq.s32.totalorder %s20, 1
      %p99 = por %p97, %p98
      %p101 = scmp.ne.s32.totalorder %s86, %s100
      %p102 = scmp.eq.s32.totalorder %s20, 0
      %p103 = por %p101, %p102
      %s105 = sadd.s32 %s104, 1
      %p108 = scmp.eq.s32.totalorder %s14, 1
      %p109 = scmp.ne.s32.totalorder %s104, %s106
      %p110 = scmp.eq.s32.totalorder %s14, 0
      %p111 = por %p109, %p110
      %p112 = scmp.ne.s32.totalorder %s104, %s106
      %p113 = scmp.eq.s32.totalorder %s19, 1
      %p114 = por %p112, %p113
      %p115 = scmp.ne.s32.totalorder %s106, %s107
      %p116 = scmp.eq.s32.totalorder %s19, 0
      %p117 = por %p115, %p116
      %p118 = scmp.ne.s32.totalorder %s106, %s107
      %p119 = scmp.eq.s32.totalorder %s20, 1
      %p120 = por %p118, %p119
      %p122 = scmp.ne.s32.totalorder %s107, %s121
      %p123 = scmp.eq.s32.totalorder %s20, 0
      %p124 = por %p122, %p123
      %s126 = sadd.s32 %s125, 1
      %p129 = scmp.eq.s32.totalorder %s14, 1
      %p130 = scmp.ne.s32.totalorder %s125, %s127
      %p131 = scmp.eq.s32.totalorder %s14, 0
      %p132 = por %p130, %p131
      %p133 = scmp.ne.s32.totalorder %s125, %s127
      %p134 = scmp.eq.s32.totalorder %s19, 1
      %p135 = por %p133, %p134
      %p136 = scmp.ne.s32.totalorder %s127, %s128
      %p137 = scmp.eq.s32.totalorder %s19, 0
      %p138 = por %p136, %p137
      %p139 = scmp.ne.s32.totalorder %s127, %s128
      %p140 = scmp.eq.s32.totalorder %s20, 1
      %p141 = por %p139, %p140
      %p143 = scmp.ne.s32.totalorder %s128, %s142
      %p144 = scmp.eq.s32.totalorder %s20, 0
      %p145 = por %p143, %p144
      %s146 = ssub.s32 %s21, %s33
      %p147 = scmp.eq.s32.totalorder %s146, 0
      %s149 = sadd.s32 %s148, 1
      %s150 = scalar_select %p147, %s148, %s149
      %p153 = pneg %p147
      %p154 = scmp.eq.s32.totalorder %s14, 1
      %p155 = por %p153, %p154
      %p156 = scmp.ne.s32.totalorder %s148, %s151
      %p157 = scmp.eq.s32.totalorder %s14, 0
      %p158 = por %p156, %p157
      %p159 = scmp.ne.s32.totalorder %s148, %s151
      %p160 = scmp.eq.s32.totalorder %s19, 1
      %p161 = por %p159, %p160
      %p162 = scmp.ne.s32.totalorder %s151, %s152
      %p163 = scmp.eq.s32.totalorder %s19, 0
      %p164 = por %p162, %p163
      %p165 = scmp.ne.s32.totalorder %s151, %s152
      %p166 = scmp.eq.s32.totalorder %s20, 1
      %p167 = por %p165, %p166
      %p169 = scmp.ne.s32.totalorder %s152, %s168
      %p170 = scmp.eq.s32.totalorder %s20, 0
      %p171 = por %p169, %p170
      %p172 = scmp.le.s32.totalorder 1, %s14
      %p173 = scmp.lt.s32.totalorder %s14, 3
      %p174 = pnand %p172, %p173
      %p175 = pneg %p174
      // Predicated region
      $region9: #{tpu_custom_call.1} parent=5 // pred_check
        _
      $region10: #{tpu_custom_call.1} parent=5 // pred_check_branch
        %177 = sbr.rel (%p174) target = $region12
      $region11: #{tpu_custom_call.1} parent=5 // pred_region
        %s178 = ssub.s32 %s14, 1
        // Predicated region
        $region13: #{tpu_custom_call.1} parent=11 // pred_check
          %p179 = pneg %p75
        $region14: #{tpu_custom_call.1} parent=11 // pred_check_branch
          %181 = sbr.rel (%p179) target = $region16
        $region15: #{tpu_custom_call.1} parent=11 // pred_region
          _
        $region16: #{tpu_custom_call.1} parent=11 // pred_fallthru
          _
        // Predicated region
        $region17: #{tpu_custom_call.1} parent=11 // pred_check
          %p182 = pneg %p96
        $region18: #{tpu_custom_call.1} parent=11 // pred_check_branch
          %184 = sbr.rel (%p182) target = $region20
        $region19: #{tpu_custom_call.1} parent=11 // pred_region
          _
        $region20: #{tpu_custom_call.1} parent=11 // pred_fallthru
          _
        // Predicated region
        $region21: #{tpu_custom_call.1} parent=11 // pred_check
          %p185 = pneg %p117
        $region22: #{tpu_custom_call.1} parent=11 // pred_check_branch
          %187 = sbr.rel (%p185) target = $region24
        $region23: #{tpu_custom_call.1} parent=11 // pred_region
          _
        $region24: #{tpu_custom_call.1} parent=11 // pred_fallthru
          _
        // Predicated region
        $region25: #{tpu_custom_call.1} parent=11 // pred_check
          %p188 = pneg %p138
        $region26: #{tpu_custom_call.1} parent=11 // pred_check_branch
          %190 = sbr.rel (%p188) target = $region28
        $region27: #{tpu_custom_call.1} parent=11 // pred_region
          _
        $region28: #{tpu_custom_call.1} parent=11 // pred_fallthru
          _
      $region12: #{tpu_custom_call.1} parent=5 // pred_fallthru
        _
      %p191 = scmp.lt.s32.totalorder %s14, 2
      // Predicated region
      $region29: #{tpu_custom_call.1} parent=5 // pred_check
        %p192 = pneg %p191
      $region30: #{tpu_custom_call.1} parent=5 // pred_check_branch
        %194 = sbr.rel (%p192) target = $region32
      $region31: #{tpu_custom_call.1} parent=5 // pred_region
        // Predicated region
        $region33: #{tpu_custom_call.1} parent=31 // pred_check
          %p195 = pneg %p48
        $region34: #{tpu_custom_call.1} parent=31 // pred_check_branch
          %197 = sbr.rel (%p195) target = $region36
        $region35: #{tpu_custom_call.1} parent=31 // pred_region
          %s198 = smul.u32 2, %s22
          %p199 = scmp.lt.s32.totalorder %s21, 1
          %s200 = scalar_select %p199, %s21, 1
          %p201 = scmp.lt.s32.totalorder %s198, 1
          %s202 = scalar_select %p201, %s198, 1
          %s203 = smul.addr %s200, 2
          %s204 = sadd.s32 %s202, %s203
          %s205 = smul.addr %s204, 4
          %s206 = scalar_lea.vmem %s0, %s205
          %s207 = smul.u32 2, %s22
        $region36: #{tpu_custom_call.1} parent=31 // pred_fallthru
          _
      $region32: #{tpu_custom_call.1} parent=5 // pred_fallthru
        _
      %p208 = scmp.le.s32.totalorder 1, %s14
      %p209 = scmp.lt.s32.totalorder %s14, 3
      %p210 = pnand %p208, %p209
      %p211 = pneg %p210
      // Predicated region
      $region37: #{tpu_custom_call.1} parent=5 // pred_check
        _
      $region38: #{tpu_custom_call.1} parent=5 // pred_check_branch
        %213 = sbr.rel (%p210) target = $region40
      $region39: #{tpu_custom_call.1} parent=5 // pred_region
        %s214 = ssub.s32 %s14, 1
        %s215 = smul.u32 2, %s24
        %p216 = scmp.lt.s32.totalorder %s23, 1
        %s217 = scalar_select %p216, %s23, 1
        %p218 = scmp.lt.s32.totalorder %s215, 1
        %s219 = scalar_select %p218, %s215, 1
        %s220 = smul.addr %s217, 2
        %s221 = sadd.s32 %s219, %s220
        %s222 = smul.addr %s221, 4
        %s223 = scalar_lea.vmem %s0, %s222
        %p224 = pneg %p54
        %p225 = pneg %p51
        %p226 = pneg %p75
        %p227 = pneg %p72
        %p228 = pneg %p96
        %p229 = pneg %p93
        %p230 = pneg %p117
        %p231 = pneg %p114
        %p232 = pneg %p138
        %p233 = pneg %p135
        %p234 = pneg %p164
        %p235 = pneg %p161
        %s236 = sand.u32 %s151, 1
        %s237 = scalar_lea.sflag [#allocation4], %s236
        %s238 = sand.u32 %s151, 1
        %s239 = scalar_lea.vmem [#allocation3], %s238
        %s240 = smul.u32 2, %s24
        %p241 = scmp.lt.s32.totalorder %s23, 1
        %s242 = scalar_select %p241, %s23, 1
        %p243 = scmp.lt.s32.totalorder %s240, 1
        %s244 = scalar_select %p243, %s240, 1
        %s245 = smul.addr %s242, 2
        %s246 = sadd.s32 %s244, %s245
        %s247 = smul.addr %s246, 4
        %s248 = scalar_lea.vmem %s0, %s247
        %s249 = smul.u32 2, %s24
        %p250 = scmp.eq.s32.totalorder %s24, 0
        // Predicated region
        $region41: #{tpu_custom_call.1} parent=39 // pred_check
          %p251 = pneg %p250
        $region42: #{tpu_custom_call.1} parent=39 // pred_check_branch
          %253 = sbr.rel (%p251) target = $region44
        $region43: #{tpu_custom_call.1} parent=39 // pred_region
          %vm254 = vcmask 24576
          %255 = vst.msk [vmem:[#allocation2] sm:$0x1] %vm254, 0.0
        $region44: #{tpu_custom_call.1} parent=39 // pred_fallthru
          _
        %v256 = vld [vmem:[%s248] sm:$0xff]
        %v257 = vld [vmem:[#allocation2] sm:$0x1]
        %259 = vst [vmem:[#allocation1] ss:$2 sm:$0xff] %v256
        %v260 = vld.sshfl [vmem:[#allocation1] sm:$0xff pattern:$0x75316420]
        %v261 = vld.sshfl [vmem:[#allocation1 + $0x8] sm:$0xff pattern:$0x75316420]
        %vm264 = vcmask 1043456
        %v265 = vsel %vm264, %v260, 0.0
        %v266 = vsel %vm264, %v261, 0.0
        %v267 = vadd.f32 %v265, %v266
        %268 = vadd.xlane.f32.xlu0 %v267
        %v269 = vpop.xlane.xlu0 %268
        %v271 = vperm.slane %v269, 0
        %v272 = vperm.slane %v269, 1
        %v273 = vperm.slane %v269, 2
        %v274 = vperm.slane %v269, 3
        %275 = vst [vmem:[#allocation1] ss:$9 sm:$0xff] %v271
        %s276 = scalar_lea.vmem [#allocation1], 1
        %277 = vst [vmem:[%s276] ss:$9 sm:$0xff] %v272
        %s278 = scalar_lea.vmem [#allocation1], 2
        %279 = vst [vmem:[%s278] ss:$9 sm:$0xff] %v273
        %s280 = scalar_lea.vmem [#allocation1], 3
        %281 = vst [vmem:[%s280] ss:$9 sm:$0xff] %v274
        %v282 = vld [vmem:[#allocation1] sm:$0xff]
        %283 = vset.pattern.permute.xlu0 0
        %284 = vperm.xlu0 %283, %v282
        %v285 = vpop.permute.xlu0 %284
        %v286 = vlaneseq
        %v287 = vand.u32 %v286, 127
        %v288 = vperm.slane %v285, %v287
        %v290 = vadd.f32 %v257, %v288
        %vm291 = vcmask 24576
        %292 = vst.msk [vmem:[#allocation2] sm:$0x1] %vm291, %v290
        // Predicated region
        $region45: #{tpu_custom_call.1} parent=39 // pred_check
          %p293 = pneg %p250
        $region46: #{tpu_custom_call.1} parent=39 // pred_check_branch
          %295 = sbr.rel (%p293) target = $region48
        $region47: #{tpu_custom_call.1} parent=39 // pred_region
          %v296 = vld [vmem:[#allocation2] sm:$0x1]
          %v297 = vmul.f32 %v296, 0.00390625
          %v298 = vld [vmem:[%s1] sm:$0xff]
          %v299 = vld [vmem:[%s1 + $0x8] sm:$0xff]
          %v300 = vld [vmem:[%s1 + $0x10] sm:$0xff]
          %v301 = vld [vmem:[%s1 + $0x18] sm:$0xff]
          %v302 = vld [vmem:[%s2] sm:$0x1]
          %vm303 = vcmask 31744
          %v305 = vsel %vm303, %v297, 0
          %v308 = vsel %vm303, %v298, 0
          %v311 = vsel %vm303, %v299, 0
          %v314 = vsel %vm303, %v300, 0
          %v317 = vsel %vm303, %v301, 0
          %319 = vmatpush.xpose.msra.mxu0 0.0
          %320 = vmatpush.xpose.msra.mxu0 0.0
          %321 = vmatpush.xpose.msra.mxu0 0.0
          %322 = vmatpush.xpose.msra.mxu0 0.0
          %323 = vmatpush.xpose.msra.mxu0 0.0
          %324 = vmatpush.xpose.msra.mxu0 0.0
          %325 = vmatpush.xpose.msra.mxu0 0.0
          %326 = vmatpush.xpose.msra.mxu0 0.0
          %327 = vmatpush.xpose.msra.mxu0 0.0
          %328 = vmatpush.xpose.msra.mxu0 0.0
          %329 = vmatpush.xpose.msra.mxu0 0.0
          %330 = vmatpush.xpose.msra.mxu0 0.0
          %331 = vmatpush.xpose.msra.mxu0 %v317
          %332 = vmatpush.xpose.msra.mxu0 %v314
          %333 = vmatpush.xpose.msra.mxu0 %v311
          %334 = vmatpush.xpose.msra.mxu0 %v308
          %335 = vmatmul.f32.gmra.mxu0 %v305
          %v336 = vpop.f32.mrf.mxu0
          %v337 = vadd.f32 %v302, %v336
          %338 = vdwg.mxu0
          %v339 = vld [vmem:[%s3] sm:$0xff]
          %v340 = vld [vmem:[%s3 + $0x8] sm:$0xff]
          %v341 = vld [vmem:[%s3 + $0x10] sm:$0xff]
          %v342 = vld [vmem:[%s3 + $0x18] sm:$0xff]
          %v343 = vld [vmem:[%s3 + $0x20] sm:$0xff]
          %v344 = vld [vmem:[%s3 + $0x28] sm:$0xff]
          %v345 = vld [vmem:[%s3 + $0x30] sm:$0xff]
          %v346 = vld [vmem:[%s3 + $0x38] sm:$0xff]
          %v347 = vld [vmem:[%s3 + $0x40] sm:$0xff]
          %v348 = vld [vmem:[%s3 + $0x48] sm:$0xff]
          %v349 = vld [vmem:[%s3 + $0x50] sm:$0xff]
          %v350 = vld [vmem:[%s3 + $0x58] sm:$0xff]
          %v351 = vld [vmem:[%s3 + $0x60] sm:$0xff]
          %v352 = vld [vmem:[%s3 + $0x68] sm:$0xff]
          %v353 = vld [vmem:[%s3 + $0x70] sm:$0xff]
          %v354 = vld [vmem:[%s3 + $0x78] sm:$0xff]
          %v355 = vld [vmem:[%s4] sm:$0x1]
          %vm356 = vcmask 261120
          %v358 = vsel %vm356, %v337, 0
          %v361 = vsel %vm356, %v339, 0
          %v364 = vsel %vm356, %v340, 0
          %v367 = vsel %vm356, %v341, 0
          %v370 = vsel %vm356, %v342, 0
          %v373 = vsel %vm356, %v343, 0
          %v376 = vsel %vm356, %v344, 0
          %v379 = vsel %vm356, %v345, 0
          %v382 = vsel %vm356, %v346, 0
          %v385 = vsel %vm356, %v347, 0
          %v388 = vsel %vm356, %v348, 0
          %v391 = vsel %vm356, %v349, 0
          %v394 = vsel %vm356, %v350, 0
          %v397 = vsel %vm356, %v351, 0
          %v400 = vsel %vm356, %v352, 0
          %v403 = vsel %vm356, %v353, 0
          %v406 = vsel %vm356, %v354, 0
          %408 = vmatpush.xpose.msra.mxu0 %v406
          %409 = vmatpush.xpose.msra.mxu0 %v403
          %410 = vmatpush.xpose.msra.mxu0 %v400
          %411 = vmatpush.xpose.msra.mxu0 %v397
          %412 = vmatpush.xpose.msra.mxu0 %v394
          %413 = vmatpush.xpose.msra.mxu0 %v391
          %414 = vmatpush.xpose.msra.mxu0 %v388
          %415 = vmatpush.xpose.msra.mxu0 %v385
          %416 = vmatpush.xpose.msra.mxu0 %v382
          %417 = vmatpush.xpose.msra.mxu0 %v379
          %418 = vmatpush.xpose.msra.mxu0 %v376
          %419 = vmatpush.xpose.msra.mxu0 %v373
          %420 = vmatpush.xpose.msra.mxu0 %v370
          %421 = vmatpush.xpose.msra.mxu0 %v367
          %422 = vmatpush.xpose.msra.mxu0 %v364
          %423 = vmatpush.xpose.msra.mxu0 %v361
          %424 = vmatmul.f32.gmra.mxu0 %v358
          %v425 = vpop.f32.mrf.mxu0
          %v426 = vadd.f32 %v355, %v425
          %427 = vdwg.mxu0
          %428 = vst [vmem:[%s239] sm:$0x1] %v426
        $region48: #{tpu_custom_call.1} parent=39 // pred_fallthru
          _
        %s429 = sand.u32 %s151, 1
        %s430 = scalar_lea.sflag [#allocation4], %s429
        %s431 = sand.u32 %s151, 1
        %s432 = scalar_lea.vmem [#allocation3], %s431
        // Predicated region
        $region49: #{tpu_custom_call.1} parent=39 // pred_check
          %p433 = pneg %p161
        $region50: #{tpu_custom_call.1} parent=39 // pred_check_branch
          %435 = sbr.rel (%p433) target = $region52
        $region51: #{tpu_custom_call.1} parent=39 // pred_region
          %437 = vsyncadd %s430, 0
          %s438 = scalar_lea.hbm %s5, %s23
          %s440 = sshll.u32 %s432, 4
          %s441 = int_to_ptr.vmem [resolvable:$true] %s440
          %s442 = sshll.u32 %s438, 4
          %s443 = int_to_ptr.hbm [resolvable:$true] %s442
          %445 = dma.vmem_to_hbm [thread:$0]  %s441, 16, %s443, %s430
        $region52: #{tpu_custom_call.1} parent=39 // pred_fallthru
          _
      $region40: #{tpu_custom_call.1} parent=5 // pred_fallthru
        _
      %p446 = scmp.le.s32.totalorder 2, %s14
      // Predicated region
      $region53: #{tpu_custom_call.1} parent=5 // pred_check
        %p447 = pneg %p446
      $region54: #{tpu_custom_call.1} parent=5 // pred_check_branch
        %449 = sbr.rel (%p447) target = $region56
      $region55: #{tpu_custom_call.1} parent=5 // pred_region
        %s450 = ssub.s32 %s14, 2
        // Predicated region
        $region57: #{tpu_custom_call.1} parent=55 // pred_check
          %p451 = pneg %p167
        $region58: #{tpu_custom_call.1} parent=55 // pred_check_branch
          %453 = sbr.rel (%p451) target = $region60
        $region59: #{tpu_custom_call.1} parent=55 // pred_region
          %s454 = sand.u32 %s152, 1
          %s455 = scalar_lea.sflag [#allocation4], %s454
          %s456 = sand.u32 %s152, 1
          %s457 = scalar_lea.vmem [#allocation3], %s456
          %459 = dma.done %s455, 16
        $region60: #{tpu_custom_call.1} parent=55 // pred_fallthru
          _
      $region56: #{tpu_custom_call.1} parent=5 // pred_fallthru
        _
    $region6: #{tpu_custom_call.1} parent=1 // loop_footer
      %s18 = sadd.s32 1, %s14
    $region7: #{tpu_custom_call.1} parent=1 // loop_footer_branch
      %13 = sbr.rel target = $region3
    $region8: #{tpu_custom_call.1} parent=1 // loop_exit
      _
    %460 = vsyncpa [#allocation4], 1
    %s461 = scalar_lea.sflag [#allocation4], 1
    %462 = vsyncpa %s461, 1

</llo_original>
